<compile_context>
chip_gen: v7x
topology: tpu7x:2x2x1
jax: 0.10.0
libtpu: 0.0.40
codegen_flags: <defaults>
</compile_context>

<pallas_src>
import numpy as np
import jax
import jax.numpy as jnp
from jax.experimental import pallas as pl
from jax.experimental.pallas import tpu as pltpu


def _cdiv(a, b):
    return -(-a // b)


def _round_up(x, m):
    return _cdiv(x, m) * m


def _largest_tile(total, base, cap):
    """Largest multiple of `base` that divides `total` and is <= cap.

    Assumes total % base == 0 and cap >= base, so a valid tile always exists.
    """
    best = base
    d = base
    limit = min(total, cap)
    while d <= limit:
        if total % d == 0:
            best = d
        d += base
    return best


def _tpu_params():
    """Generation-aware VMEM sizing (v5e/v6e: 128 MiB & 1 TC, v7x: 64 MiB & 2 TCs)."""
    try:
        vmem_cap = int(pltpu.get_tpu_info().vmem_capacity_bytes)
    except Exception:
        vmem_cap = 64 * 1024 * 1024           # unknown -> assume the smallest (v7x)
    if vmem_cap > 96 * 1024 * 1024:           # v5e / v6e: 128 MiB physical VMEM
        return {"budget": 48 << 20, "limit": 64 << 20, "two_tc": False}
    # v7x: 64 MiB physical VMEM per TensorCore, 2 TensorCores per chip
    return {"budget": 20 << 20, "limit": 40 << 20, "two_tc": True}


# ---------------------------------------------------------------------------
# Kernels
# ---------------------------------------------------------------------------

def _linear_kernel_1k(x_ref, w_ref, b_ref, o_ref):
    """Single K step: no accumulator scratch, no branches."""
    o_ref[...] = (jnp.dot(x_ref[...], w_ref[...],
                          preferred_element_type=jnp.float32)
                  + b_ref[...]).astype(o_ref.dtype)


def _linear_kernel_acc(x_ref, w_ref, b_ref, o_ref, acc_ref):
    """K-tiled path: fp32 accumulator with the bias folded into its init."""
    k = pl.program_id(2)

    @pl.when(k == 0)
    def _():
        acc_ref[...] = jnp.broadcast_to(b_ref[...].astype(jnp.float32),
                                        acc_ref.shape)

    acc_ref[...] += jnp.dot(x_ref[...], w_ref[...],
                            preferred_element_type=jnp.float32)

    @pl.when(k == pl.num_programs(2) - 1)
    def _():
        o_ref[...] = acc_ref[...].astype(o_ref.dtype)


# ---------------------------------------------------------------------------
# Projection wrapper
# ---------------------------------------------------------------------------

def linear_proj(x2d, w_pad, b_pad):
    """y = x2d @ w_pad + b_pad.

    x2d: (M, K), w_pad: (K, Npad), b_pad: (1, Npad); K % 128 == 0, Npad % 128 == 0.
    Returns (M, Npad); the caller slices off the N padding.
    """
    M, K = x2d.shape
    Kw, Npad = w_pad.shape
    assert K == Kw and K % 128 == 0 and Npad % 128 == 0 and b_pad.shape == (1, Npad)

    params = _tpu_params()
    budget = params["budget"]
    bytes_el = jnp.dtype(x2d.dtype).itemsize
    bytes_w = jnp.dtype(w_pad.dtype).itemsize

    # ---- tile selection ------------------------------------------------------
    # tn cap 1024: when Npad fits one tile the weight block index is
    # grid-invariant (N axis has a single step) so the weight is DMA'd once.
    tn = _largest_tile(Npad, 128, 1024)
    tk = _largest_tile(K, 128, 2048)
    single_k = (tk == K)
    tm = M if M <= 512 else 512               # full-extent block when M is small

    def vmem_bytes(tm_, tk_, tn_):
        b = (2 * tm_ * tk_ * bytes_el         # x: double-buffered
             + 2 * tk_ * tn_ * bytes_w        # w: double-buffered
             + 2 * tn_ * 4                    # bias (fp32): double-buffered
             + 2 * tm_ * tn_ * bytes_el)      # out: double-buffered
        if not single_k:
            b += tm_ * tn_ * 4                # fp32 accumulator scratch
        return b

    # Shrink order (perf review): tk first, then tn, then tm (floored at 128
    # first so MXU row fill is preserved while tk/tn are still maximal).
    while (not single_k) and tk > 256 and vmem_bytes(tm, tk, tn) > budget:
        tk = _largest_tile(K, 128, tk // 2)
    while tn > 128 and vmem_bytes(tm, tk, tn) > budget:
        tn = _largest_tile(Npad, 128, tn // 2)
    while tm > 128 and vmem_bytes(tm, tk, tn) > budget:
        tm = max(128, _round_up(tm // 2, 8))
    while tm > 8 and vmem_bytes(tm, tk, tn) > budget:
        tm = max(8, _round_up(tm // 2, 8))

    # Megacore: only worth splitting M on 2-TensorCore chips and only when the
    # N axis already has a single step (otherwise N feeds both cores).
    if params["two_tc"] and Npad // tn == 1 and _cdiv(M, tm) == 1 and M >= 256:
        tm = _round_up(_cdiv(M, 2), 8)

    cost = pl.CostEstimate(
        flops=2 * M * K * Npad,
        transcendentals=0,
        bytes_accessed=bytes_el * (M * K + M * Npad) + bytes_w * K * Npad + 4 * Npad,
    )

    if single_k:
        grid = (_cdiv(M, tm), Npad // tn)
        return pl.pallas_call(
            _linear_kernel_1k,
            out_shape=jax.ShapeDtypeStruct((M, Npad), x2d.dtype),
            grid_spec=pltpu.PrefetchScalarGridSpec(
                num_scalar_prefetch=0,
                grid=grid,
                in_specs=[
                    pl.BlockSpec((tm, K), lambda i, j: (i, 0)),
                    pl.BlockSpec((K, tn), lambda i, j: (0, j)),
                    pl.BlockSpec((1, tn), lambda i, j: (0, j)),
                ],
                out_specs=pl.BlockSpec((tm, tn), lambda i, j: (i, j)),
            ),
            compiler_params=pltpu.CompilerParams(
                dimension_semantics=("parallel", "parallel"),
                vmem_limit_bytes=params["limit"],
            ),
            cost_estimate=cost,
        )(x2d, w_pad, b_pad)

    grid = (_cdiv(M, tm), Npad // tn, K // tk)
    return pl.pallas_call(
        _linear_kernel_acc,
        out_shape=jax.ShapeDtypeStruct((M, Npad), x2d.dtype),
        grid_spec=pltpu.PrefetchScalarGridSpec(
            num_scalar_prefetch=0,
            grid=grid,
            in_specs=[
                pl.BlockSpec((tm, tk), lambda i, j, k: (i, k)),
                pl.BlockSpec((tk, tn), lambda i, j, k: (k, j)),
                pl.BlockSpec((1, tn), lambda i, j, k: (0, j)),
            ],
            out_specs=pl.BlockSpec((tm, tn), lambda i, j, k: (i, j)),
            scratch_shapes=[pltpu.VMEM((tm, tn), jnp.float32)],
        ),
        compiler_params=pltpu.CompilerParams(
            dimension_semantics=("parallel", "parallel", "arbitrary"),
            vmem_limit_bytes=params["limit"],
        ),
        cost_estimate=cost,
    )(x2d, w_pad, b_pad)


# ---------------------------------------------------------------------------
# Module
# ---------------------------------------------------------------------------

class PixelShuffle3DPallas:
    """JAX/Pallas port of PixelShuffle3D (layer_type='linear') forward."""

    def __init__(self, image_size, patch_size, in_dim, out_dim,
                 layer_type="linear", scale_factor=0.5, key=None,
                 use_bf16=False):
        # TODO(synk): 'mlp' layer_type (Linear-GELU-Linear) not wired; only 'linear'.
        assert layer_type == "linear"
        self.image_size = image_size
        self.patch_size = patch_size
        self.in_dim = in_dim
        self.out_dim = out_dim
        self.scale_factor = scale_factor
        self.use_bf16 = use_bf16
        self.patches_ori_tuple = [img // pch for img, pch in zip(image_size, patch_size)]
        self.num_patches_ori = int(np.prod(self.patches_ori_tuple))
        self.num_patches_downsample = int(self.num_patches_ori * scale_factor ** 3)
        self.shuffle_dim = int(in_dim / scale_factor ** 3)

        if key is None:
            key = jax.random.PRNGKey(42)
        kw, kb = jax.random.split(key)
        bound = 1.0 / np.sqrt(self.shuffle_dim)
        # (K, N) = PyTorch nn.Linear weight (N, K) transposed; deterministic init.
        self.w = jax.random.uniform(kw, (self.shuffle_dim, self.out_dim),
                                    jnp.float32, minval=-bound, maxval=bound)
        self.b = jax.random.uniform(kb, (1, self.out_dim),
                                    jnp.float32, minval=-bound, maxval=bound)

        # Lane-dense kernel operands: zero-pad K (rows) and N (cols) to multiples
        # of 128.  Pad columns of the output are sliced off after the kernel;
        # pad rows of K multiply zero-padded x columns, so results are exact.
        self.k_pad = _round_up(self.shuffle_dim, 128)
        self.n_pad = _round_up(self.out_dim, 128)
        w_pad = jnp.pad(self.w, ((0, self.k_pad - self.shuffle_dim),
                                 (0, self.n_pad - self.out_dim)))
        self.w_pad = w_pad.astype(jnp.bfloat16) if use_bf16 else w_pad
        self.b_pad = jnp.pad(self.b, ((0, 0), (0, self.n_pad - self.out_dim)))

    def __call__(self, x):
        # x: (B, num_patches_ori, in_dim)
        B = x.shape[0]
        nw, nh, nz = (int(p * self.scale_factor) for p in self.patches_ori_tuple)
        nc = self.shuffle_dim
        if self.use_bf16:
            x = x.astype(jnp.bfloat16)   # halves HBM traffic of the transpose copy
        # torch: reshape(-1, *patches, in_dim) then .view(n,nw,nh,nz,nc): both are
        # reshapes of contiguous data -> compose into one free reshape.
        x5 = x.reshape(B, nw, nh, nz, nc)
        # torch: permute(0,2,1,3,4).contiguous() followed by permute(0,4,1,2,3);
        # composed into a single HBM transpose copy.
        x5 = jnp.transpose(x5, (0, 4, 2, 1, 3))          # (B, nc, nh, nw, nz)
        # torch: .reshape(-1, num_patches_downsample, shuffle_dim) on the permuted
        # tensor (row-major reinterpretation); batch/patch dims flattened for the
        # matmul and restored afterwards.
        x2d = x5.reshape(B * self.num_patches_downsample, self.shuffle_dim)
        if self.k_pad != self.shuffle_dim:
            x2d = jnp.pad(x2d, ((0, 0), (0, self.k_pad - self.shuffle_dim)))
        y = linear_proj(x2d, self.w_pad, self.b_pad)
        y = y[:, : self.out_dim]                         # drop lane-padding columns
        return y.reshape(B, self.num_patches_downsample, self.out_dim)


if __name__ == "__main__":
    # Small config: image 16^3, patch 4^3 -> 4x4x4 = 64 patches per sample.
    image_size = (16, 16, 16)
    patch_size = (4, 4, 4)
    in_dim, out_dim = 32, 64
    batch = 2

    mod = PixelShuffle3DPallas(image_size, patch_size, in_dim, out_dim,
                               layer_type="linear", scale_factor=0.5,
                               key=jax.random.PRNGKey(42))

    key = jax.random.PRNGKey(0)
    x = jax.random.normal(key, (batch, mod.num_patches_ori, in_dim), jnp.float32)

    fwd = jax.jit(lambda t: mod(t))
    out = jax.block_until_ready(fwd(x))

    # Pure-JAX reference mirroring the PyTorch forward step by step
    # (two separate permutes, un-composed) + fp32 Linear at highest precision.
    xr = x.reshape(-1, *mod.patches_ori_tuple, in_dim)
    n, w, h, z, c = xr.shape
    s = mod.scale_factor
    xr = xr.reshape(n, int(w * s), int(h * s), int(z * s), int(c / s ** 3))
    xr = jnp.transpose(xr, (0, 2, 1, 3, 4))        # torch .permute(0,2,1,3,4)
    xr = jnp.transpose(xr, (0, 4, 1, 2, 3))        # torch .permute(0,4,1,2,3)
    xr = xr.reshape(-1, mod.num_patches_downsample, mod.shuffle_dim)
    ref = jnp.einsum("bnk,ko->bno", xr, mod.w,
                     precision=jax.lax.Precision.HIGHEST) + mod.b[None]

    assert out.shape == (batch, mod.num_patches_downsample, out_dim)
    np.testing.assert_allclose(np.asarray(out), np.asarray(ref),
                               rtol=1e-4, atol=1e-4)

    print("KERNEL_OK")
</pallas_src>

<mosaic_0001>
module attributes {stable_mosaic.version = 11 : i64} {
  func.func @_linear_kernel_1k(%arg0: i32, %arg1: i32, %arg2: memref<16x256xf32, #tpu.memory_space<vmem>>, %arg3: memref<256x128xf32, #tpu.memory_space<vmem>>, %arg4: memref<1x128xf32, #tpu.memory_space<vmem>>, %arg5: memref<16x128xf32, #tpu.memory_space<vmem>>) attributes {dimension_semantics = [#tpu.dimension_semantics<parallel>, #tpu.dimension_semantics<parallel>], iteration_bounds = array<i64: 1, 1>, scalar_prefetch = 0 : i64, scratch_operands = 0 : i64, tpu.core_type = #tpu.core_type<tc>, window_params = [{transform_indices = @transform_0, window_bounds = array<i64: 16, 256>}, {transform_indices = @transform_1, window_bounds = array<i64: 256, 128>}, {transform_indices = @transform_2, window_bounds = array<i64: 1, 128>}, {transform_indices = @transform_3, window_bounds = array<i64: 16, 128>}]} {
    %c0 = arith.constant 0 : index
    %c0_0 = arith.constant 0 : index
    %0 = vector.load %arg2[%c0, %c0_0] : memref<16x256xf32, #tpu.memory_space<vmem>>, vector<16x256xf32>
    %c0_1 = arith.constant 0 : index
    %c0_2 = arith.constant 0 : index
    %1 = vector.load %arg3[%c0_1, %c0_2] : memref<256x128xf32, #tpu.memory_space<vmem>>, vector<256x128xf32>
    %cst = arith.constant dense<0.000000e+00> : vector<16x128xf32>
    %2 = tpu.matmul %0, %1, %cst {dimension_numbers = #tpu.dot_dimension_numbers<[1], [0], [0], [1], [0, 0, 1, 1], [], []>} : vector<16x256xf32>, vector<256x128xf32>, vector<16x128xf32> -> vector<16x128xf32>
    %c0_3 = arith.constant 0 : index
    %c0_4 = arith.constant 0 : index
    %3 = vector.load %arg4[%c0_3, %c0_4] : memref<1x128xf32, #tpu.memory_space<vmem>>, vector<1x128xf32>
    %4 = vector.broadcast %3 : vector<1x128xf32> to vector<16x128xf32>
    %5 = arith.addf %2, %4 : vector<16x128xf32>
    %c0_5 = arith.constant 0 : index
    %c0_6 = arith.constant 0 : index
    %6 = vector.load %arg5[%c0_5, %c0_6] : memref<16x128xf32, #tpu.memory_space<vmem>>, vector<16x128xf32>
    tpu.vector_store %arg5[%c0_5, %c0_6], %5 {strides = array<i32>} : memref<16x128xf32, #tpu.memory_space<vmem>>, vector<16x128xf32>,
    return
  }
  func.func @transform_0(%arg0: i32, %arg1: i32) -> (i32, i32) {
    %c0_i32 = arith.constant 0 : i32
    %c0_i32_0 = arith.constant 0 : i32
    return %arg0, %c0_i32 : i32, i32
  }
  func.func @transform_1(%arg0: i32, %arg1: i32) -> (i32, i32) {
    %c0_i32 = arith.constant 0 : i32
    %c0_i32_0 = arith.constant 0 : i32
    return %c0_i32, %arg1 : i32, i32
  }
  func.func @transform_2(%arg0: i32, %arg1: i32) -> (i32, i32) {
    %c0_i32 = arith.constant 0 : i32
    %c0_i32_0 = arith.constant 0 : i32
    return %c0_i32, %arg1 : i32, i32
  }
  func.func @transform_3(%arg0: i32, %arg1: i32) -> (i32, i32) {
    %c0_i32 = arith.constant 0 : i32
    return %arg0, %arg1 : i32, i32
  }
}

</mosaic_0001>

<llo_original>
// kernel: _lambda_.1
$region0: #{_lambda_.1}
  #allocation0 [shape = 'u32[]', space=smem, size = 0x4, offset = 0x4, fixed_abs, tag = 'smem constant byte address 0x4 - core index']
  #allocation1 [shape = 'u32[144,128]{1,0:T(1,128)}', space=vmem, size = 0x12000, scoped, tag = 'internal scratch']
  %s0 = inlined_call_operand.vmem [shape: f32[16,256], index: 0, kind: input, shape index: {}]
  %s1 = inlined_call_operand.vmem [shape: f32[256,128], index: 1, kind: input, shape index: {}]
  %s2 = inlined_call_operand.vmem [shape: f32[1,128], index: 2, kind: input, shape index: {}]
  %s3 = inlined_call_operand.vmem [shape: f32[16,128], index: 3, kind: output, shape index: {}]
  %s4 = sld [smem:[#allocation0]]
  $region22: #{_lambda_.1} parent=0
    _
  %s6 = ssub.s32 1, %s4
  %s7 = scalar_select 0, %s6, %s4
  // Predicated region
  $region2: #{_lambda_.1} parent=0 // pred_check
    _
  $region3: #{_lambda_.1} parent=0 // pred_check_branch
    %9 = sbr.rel (0) target = $region5
  $region4: #{_lambda_.1} parent=0 // pred_region
    _
  $region5: #{_lambda_.1} parent=0 // pred_fallthru
    _
  // Predicated region
  $region6: #{_lambda_.1} parent=0 // pred_check
    _
  $region7: #{_lambda_.1} parent=0 // pred_check_branch
    %11 = sbr.rel (0) target = $region9
  $region8: #{_lambda_.1} parent=0 // pred_region
    _
  $region9: #{_lambda_.1} parent=0 // pred_fallthru
    _
  // Predicated region
  $region10: #{_lambda_.1} parent=0 // pred_check
    _
  $region11: #{_lambda_.1} parent=0 // pred_check_branch
    %13 = sbr.rel (0) target = $region13
  $region12: #{_lambda_.1} parent=0 // pred_region
    _
  $region13: #{_lambda_.1} parent=0 // pred_fallthru
    _
  %v14 = vld [vmem:[%s0] sm:$0xff]
  %v15 = vld [vmem:[%s0 + $0x8] sm:$0xff]
  %v16 = vld [vmem:[%s0 + $0x10] sm:$0xff]
  %v17 = vld [vmem:[%s0 + $0x18] sm:$0xff]
  %v18 = vld [vmem:[%s1] sm:$0xff]
  %v19 = vld [vmem:[%s1 + $0x8] sm:$0xff]
  %v20 = vld [vmem:[%s1 + $0x10] sm:$0xff]
  %v21 = vld [vmem:[%s1 + $0x18] sm:$0xff]
  %v22 = vld [vmem:[%s1 + $0x20] sm:$0xff]
  %v23 = vld [vmem:[%s1 + $0x28] sm:$0xff]
  %v24 = vld [vmem:[%s1 + $0x30] sm:$0xff]
  %v25 = vld [vmem:[%s1 + $0x38] sm:$0xff]
  %v26 = vld [vmem:[%s1 + $0x40] sm:$0xff]
  %v27 = vld [vmem:[%s1 + $0x48] sm:$0xff]
  %v28 = vld [vmem:[%s1 + $0x50] sm:$0xff]
  %v29 = vld [vmem:[%s1 + $0x58] sm:$0xff]
  %v30 = vld [vmem:[%s1 + $0x60] sm:$0xff]
  %v31 = vld [vmem:[%s1 + $0x68] sm:$0xff]
  %v32 = vld [vmem:[%s1 + $0x70] sm:$0xff]
  %v33 = vld [vmem:[%s1 + $0x78] sm:$0xff]
  %v34 = vld [vmem:[%s1 + $0x80] sm:$0xff]
  %v35 = vld [vmem:[%s1 + $0x88] sm:$0xff]
  %v36 = vld [vmem:[%s1 + $0x90] sm:$0xff]
  %v37 = vld [vmem:[%s1 + $0x98] sm:$0xff]
  %v38 = vld [vmem:[%s1 + $0xa0] sm:$0xff]
  %v39 = vld [vmem:[%s1 + $0xa8] sm:$0xff]
  %v40 = vld [vmem:[%s1 + $0xb0] sm:$0xff]
  %v41 = vld [vmem:[%s1 + $0xb8] sm:$0xff]
  %v42 = vld [vmem:[%s1 + $0xc0] sm:$0xff]
  %v43 = vld [vmem:[%s1 + $0xc8] sm:$0xff]
  %v44 = vld [vmem:[%s1 + $0xd0] sm:$0xff]
  %v45 = vld [vmem:[%s1 + $0xd8] sm:$0xff]
  %v46 = vld [vmem:[%s1 + $0xe0] sm:$0xff]
  %v47 = vld [vmem:[%s1 + $0xe8] sm:$0xff]
  %v48 = vld [vmem:[%s1 + $0xf0] sm:$0xff]
  %v49 = vld [vmem:[%s1 + $0xf8] sm:$0xff]
  %v50 = vld [vmem:[%s2] sm:$0x1]
  %v52 = vlaneseq
  %v53 = vshrl.u32 %v52, 7
  %v54 = vsub.s32 0, %v53
  %v55 = vrot.slane %v50, %v54
  %57 = vmatprep.subr.mxu0 0.0
  %58 = vmatpush1.msra.mxu0 %v18
  %59 = vmatprep.subr.mxu0 0.0
  %60 = vmatpush1.msra.mxu0 %v19
  %61 = vmatprep.subr.mxu0 0.0
  %62 = vmatpush1.msra.mxu0 %v20
  %63 = vmatprep.subr.mxu0 0.0
  %64 = vmatpush1.msra.mxu0 %v21
  %65 = vmatprep.subr.mxu0 0.0
  %66 = vmatpush1.msra.mxu0 %v22
  %67 = vmatprep.subr.mxu0 0.0
  %68 = vmatpush1.msra.mxu0 %v23
  %69 = vmatprep.subr.mxu0 0.0
  %70 = vmatpush1.msra.mxu0 %v24
  %71 = vmatprep.subr.mxu0 0.0
  %72 = vmatpush1.msra.mxu0 %v25
  %73 = vmatprep.subr.mxu0 0.0
  %74 = vmatpush1.msra.mxu0 %v26
  %75 = vmatprep.subr.mxu0 0.0
  %76 = vmatpush1.msra.mxu0 %v27
  %77 = vmatprep.subr.mxu0 0.0
  %78 = vmatpush1.msra.mxu0 %v28
  %79 = vmatprep.subr.mxu0 0.0
  %80 = vmatpush1.msra.mxu0 %v29
  %81 = vmatprep.subr.mxu0 0.0
  %82 = vmatpush1.msra.mxu0 %v30
  %83 = vmatprep.subr.mxu0 0.0
  %84 = vmatpush1.msra.mxu0 %v31
  %85 = vmatprep.subr.mxu0 0.0
  %86 = vmatpush1.msra.mxu0 %v32
  %87 = vmatprep.subr.mxu0 0.0
  %88 = vmatpush1.msra.mxu0 %v33
  %89 = vmatprep.subr.mxu0 0.0
  %90 = vmatpush1.msra.mxu0 %v34
  %91 = vmatprep.subr.mxu0 0.0
  %92 = vmatpush1.msra.mxu0 %v35
  %93 = vmatprep.subr.mxu0 0.0
  %94 = vmatpush1.msra.mxu0 %v36
  %95 = vmatprep.subr.mxu0 0.0
  %96 = vmatpush1.msra.mxu0 %v37
  %97 = vmatprep.subr.mxu0 0.0
  %98 = vmatpush1.msra.mxu0 %v38
  %99 = vmatprep.subr.mxu0 0.0
  %100 = vmatpush1.msra.mxu0 %v39
  %101 = vmatprep.subr.mxu0 0.0
  %102 = vmatpush1.msra.mxu0 %v40
  %103 = vmatprep.subr.mxu0 0.0
  %104 = vmatpush1.msra.mxu0 %v41
  %105 = vmatprep.subr.mxu0 0.0
  %106 = vmatpush1.msra.mxu0 %v42
  %107 = vmatprep.subr.mxu0 0.0
  %108 = vmatpush1.msra.mxu0 %v43
  %109 = vmatprep.subr.mxu0 0.0
  %110 = vmatpush1.msra.mxu0 %v44
  %111 = vmatprep.subr.mxu0 0.0
  %112 = vmatpush1.msra.mxu0 %v45
  %113 = vmatprep.subr.mxu0 0.0
  %114 = vmatpush1.msra.mxu0 %v46
  %115 = vmatprep.subr.mxu0 0.0
  %116 = vmatpush1.msra.mxu0 %v47
  %117 = vmatprep.subr.mxu0 0.0
  %118 = vmatpush1.msra.mxu0 %v48
  %119 = vmatprep.subr.mxu0 0.0
  %120 = vmatpush1.msra.mxu0 %v49
  %121 = vmatprep.mubr.f32.mxu0 %v15
  %122 = vmatmul.mubr.f32.gmra.mrb[0].mxu0 %v14
  %v123 = vpop.f32.mrb[0].mxu0
  %v124 = vadd.f32 %v55, %v123
  %v125 = vpop.f32.mrb[0].mxu0
  %126 = vmatprep.mubr.f32.mxu0 %v17
  %127 = vmatmul.mubr.f32.gmra.mrb[0].mxu0 %v16
  %v128 = vpop.f32.mrb[0].mxu0
  %v129 = vadd.f32 %v55, %v128
  %v130 = vpop.f32.mrb[0].mxu0
  %131 = vdwg.mxu0
  %132 = vst [vmem:[%s3] sm:$0xff] %v124
  %133 = vst [vmem:[%s3 + $0x8] sm:$0xff] %v129
  // Predicated region
  $region14: #{_lambda_.1} parent=0 // pred_check
    _
  $region15: #{_lambda_.1} parent=0 // pred_check_branch
    %135 = sbr.rel (0) target = $region17
  $region16: #{_lambda_.1} parent=0 // pred_region
    _
  $region17: #{_lambda_.1} parent=0 // pred_fallthru
    _
  // Predicated region
  $region18: #{_lambda_.1} parent=0 // pred_check
    _
  $region19: #{_lambda_.1} parent=0 // pred_check_branch
    %137 = sbr.rel (0) target = $region21
  $region20: #{_lambda_.1} parent=0 // pred_region
    _
  $region21: #{_lambda_.1} parent=0 // pred_fallthru
    _

</llo_original>
